<compile_context>
chip_gen: v7x
topology: tpu7x:2x2x1
jax: 0.10.0
libtpu: 0.0.40
codegen_flags: <defaults>
</compile_context>

<pallas_src>
import functools

import jax
import jax.numpy as jnp
from jax.experimental import pallas as pl
from jax.experimental.pallas import tpu as pltpu

EPS = 1e-5  # nn.BatchNorm2d default eps


# ----------------------------------------------------------------------------
# tile-size helpers
# ----------------------------------------------------------------------------
def _pick_batch_tile(n, target=8):
    t = min(n, target)
    while n % t != 0:
        t -= 1
    return t


def _pick_spatial_tile(hw, c, bn, budget_bytes=4 << 20):
    """Largest multiple of 128 dividing hw with bn*c*tile*4B <= budget."""
    if hw % 128 != 0:
        # TODO(synk): pad / fold N into the minor dim for ragged spatial sizes
        # (e.g. 7x7=49) instead of falling back to a full ragged last dim.
        return hw
    max_t = (budget_bytes // (bn * c * 4)) // 128 * 128
    t = min(hw, max(128, max_t))
    while hw % t != 0:
        t -= 128
    return t


# ----------------------------------------------------------------------------
# pass 1: per-channel batch statistics (mean, rstd)
# ----------------------------------------------------------------------------
def _stats_kernel(x_ref, mean_ref, rstd_ref, sum_acc, sq_acc, *, total):
    b = pl.program_id(0)
    s = pl.program_id(1)

    @pl.when(jnp.logical_and(b == 0, s == 0))
    def _():
        sum_acc[...] = jnp.zeros_like(sum_acc)
        sq_acc[...] = jnp.zeros_like(sq_acc)

    xt = x_ref[...].astype(jnp.float32)          # (bn, C, T) tile, cast in-loop
    sum_acc[...] += jnp.sum(xt, axis=0)          # (C, T) -- pure VPU adds
    sq_acc[...] += jnp.sum(xt * xt, axis=0)      # (C, T)

    @pl.when(jnp.logical_and(b == pl.num_programs(0) - 1,
                             s == pl.num_programs(1) - 1))
    def _():
        inv_n = jnp.float32(1.0 / total)
        # one cross-lane (XLU) reduce per channel, only at the very end
        mean = jnp.sum(sum_acc[...], axis=1, keepdims=True) * inv_n      # (C, 1)
        var = jnp.sum(sq_acc[...], axis=1, keepdims=True) * inv_n - mean * mean
        var = jnp.maximum(var, 0.0)
        mean_ref[...] = mean
        rstd_ref[...] = jax.lax.rsqrt(var + EPS)


# ----------------------------------------------------------------------------
# pass 2: fused normalize + conditional affine (single FMA per element)
# ----------------------------------------------------------------------------
def _apply_kernel(x_ref, scale_ref, bias_ref, o_ref):
    x = x_ref[...].astype(jnp.float32)                        # (bn, C, T)
    o_ref[...] = (scale_ref[...] * x + bias_ref[...]).astype(o_ref.dtype)


# ----------------------------------------------------------------------------
# wrapper
# ----------------------------------------------------------------------------
def conditional_batch_norm_2d(x_nchw, y, embed_weight):
    """x_nchw: (N, C, H, W), y: (N,) int, embed_weight: (num_classes, 2C)."""
    n, c, h, w = x_nchw.shape
    hw = h * w
    x3 = x_nchw.reshape(n, c, hw)

    # ---- pass 1: per-channel batch statistics ---------------------------
    bn_s = _pick_batch_tile(n)
    t_s = _pick_spatial_tile(hw, c, bn_s)
    grid_s = (n // bn_s, hw // t_s)

    mean, rstd = pl.pallas_call(
        functools.partial(_stats_kernel, total=n * hw),
        out_shape=(jax.ShapeDtypeStruct((c, 1), jnp.float32),
                   jax.ShapeDtypeStruct((c, 1), jnp.float32)),
        grid_spec=pltpu.PrefetchScalarGridSpec(
            num_scalar_prefetch=0,
            grid=grid_s,
            in_specs=[pl.BlockSpec((bn_s, c, t_s), lambda b, s: (b, 0, s))],
            out_specs=(pl.BlockSpec((c, 1), lambda b, s: (0, 0)),
                       pl.BlockSpec((c, 1), lambda b, s: (0, 0))),
            scratch_shapes=[pltpu.VMEM((c, t_s), jnp.float32),
                            pltpu.VMEM((c, t_s), jnp.float32)]),
        compiler_params=pltpu.CompilerParams(
            dimension_semantics=("arbitrary", "arbitrary"),
            vmem_limit_bytes=32 << 20),
    )(x3)

    # ---- embedding lookup + affine folding (cheap O(N*C) work in XLA) ---
    # out = gamma*(x-mean)*rstd + beta  ==  scale*x + bias
    y = y.astype(jnp.int32)
    gamma = embed_weight[y, :c].astype(jnp.float32)            # (N, C)
    beta = embed_weight[y, c:].astype(jnp.float32)             # (N, C)
    mean_row = mean.reshape(1, c)
    rstd_row = rstd.reshape(1, c)
    scale = (gamma * rstd_row).reshape(n, c, 1)                # (N, C, 1)
    bias = (beta - gamma * rstd_row * mean_row).reshape(n, c, 1)

    # ---- pass 2: fused normalize + conditional affine --------------------
    bn_a = _pick_batch_tile(n)
    t_a = _pick_spatial_tile(hw, c, bn_a)
    grid_a = (n // bn_a, hw // t_a)

    out = pl.pallas_call(
        _apply_kernel,
        out_shape=jax.ShapeDtypeStruct((n, c, hw), x_nchw.dtype),
        grid_spec=pltpu.PrefetchScalarGridSpec(
            num_scalar_prefetch=0,
            grid=grid_a,
            in_specs=[pl.BlockSpec((bn_a, c, t_a), lambda b, s: (b, 0, s)),
                      pl.BlockSpec((bn_a, c, 1), lambda b, s: (b, 0, 0)),
                      pl.BlockSpec((bn_a, c, 1), lambda b, s: (b, 0, 0))],
            out_specs=pl.BlockSpec((bn_a, c, t_a), lambda b, s: (b, 0, s))),
        compiler_params=pltpu.CompilerParams(
            dimension_semantics=("parallel", "parallel"),
            vmem_limit_bytes=32 << 20),
    )(x3, scale, bias)

    return out.reshape(n, c, h, w)


# ----------------------------------------------------------------------------
# pure-JAX reference mirroring the PyTorch training-mode forward
# ----------------------------------------------------------------------------
def _reference(x, y, embed_weight):
    c = x.shape[1]
    mean = jnp.mean(x, axis=(0, 2, 3), keepdims=True)
    var = jnp.mean((x - mean) ** 2, axis=(0, 2, 3), keepdims=True)
    x_hat = (x - mean) / jnp.sqrt(var + EPS)
    gb = embed_weight[y]                                   # (N, 2C)
    gamma = gb[:, :c].reshape(-1, c, 1, 1)
    beta = gb[:, c:].reshape(-1, c, 1, 1)
    return gamma * x_hat + beta


if __name__ == "__main__":
    N, C, H, W = 2, 4, 16, 16
    NUM_CLASSES = 10

    key = jax.random.PRNGKey(0)
    kx, ky, kw = jax.random.split(key, 3)

    x = jax.random.normal(kx, (N, C, H, W), dtype=jnp.float32)
    y = jax.random.randint(ky, (N,), 0, NUM_CLASSES, dtype=jnp.int32)

    # Module __init__: embed.weight[:, :C] = 1.0, embed.weight[:, C:] = 0.0,
    # plus a small deterministic perturbation so the conditional gather/affine
    # path is non-trivially exercised.
    embed_weight = jnp.concatenate(
        [jnp.ones((NUM_CLASSES, C), jnp.float32),
         jnp.zeros((NUM_CLASSES, C), jnp.float32)], axis=1)
    embed_weight = embed_weight + 0.05 * jax.random.normal(
        kw, (NUM_CLASSES, 2 * C), dtype=jnp.float32)

    # NOTE: out-of-range class ids would read clamped rows via the gather
    # (PyTorch raises); caller is expected to pass valid ids.
    # TODO(synk): running_mean/running_var update (momentum=0.001, unbiased var)
    # is a training side-effect that does not affect the forward output; not
    # implemented.

    out = conditional_batch_norm_2d(x, y, embed_weight)
    jax.block_until_ready(out)

    ref = _reference(x, y, embed_weight)
    assert out.shape == (N, C, H, W)
    assert jnp.allclose(out, ref, atol=1e-4, rtol=1e-4), "mismatch vs JAX reference"

    print("KERNEL_OK")
</pallas_src>

<mosaic_0001>
module attributes {stable_mosaic.version = 11 : i64} {
  func.func @_stats_kernel(%arg0: i32, %arg1: i32, %arg2: memref<2x4x256xf32, #tpu.memory_space<vmem>>, %arg3: memref<4x1xf32, #tpu.memory_space<vmem>>, %arg4: memref<4x1xf32, #tpu.memory_space<vmem>>, %arg5: memref<4x256xf32, #tpu.memory_space<vmem>>, %arg6: memref<4x256xf32, #tpu.memory_space<vmem>>) attributes {dimension_semantics = [#tpu.dimension_semantics<arbitrary>, #tpu.dimension_semantics<arbitrary>], iteration_bounds = array<i64: 1, 1>, scalar_prefetch = 0 : i64, scratch_operands = 2 : i64, tpu.core_type = #tpu.core_type<tc>, window_params = [{transform_indices = @transform_0, window_bounds = array<i64: 2, 4, 256>}, {pipeline_mode = #tpu.pipeline_mode<synchronous>, transform_indices = @transform_1, window_bounds = array<i64: 4, 1>}, {pipeline_mode = #tpu.pipeline_mode<synchronous>, transform_indices = @transform_2, window_bounds = array<i64: 4, 1>}]} {
    %c0_i32 = arith.constant 0 : i32
    %0 = arith.cmpi eq, %arg0, %c0_i32 : i32
    %c0_i32_0 = arith.constant 0 : i32
    %1 = arith.cmpi eq, %arg1, %c0_i32_0 : i32
    %2 = arith.andi %0, %1 : i1
    %3 = arith.extui %2 : i1 to i32
    %c0_i32_1 = arith.constant 0 : i32
    %4 = arith.cmpi ne, %3, %c0_i32_1 : i32
    scf.if %4 {
      %cst_16 = arith.constant 0.000000e+00 : f32
      %20 = vector.broadcast %cst_16 : f32 to vector<4x256xf32>
      %c0_17 = arith.constant 0 : index
      %c0_18 = arith.constant 0 : index
      %21 = vector.load %arg5[%c0_17, %c0_18] : memref<4x256xf32, #tpu.memory_space<vmem>>, vector<4x256xf32>
      tpu.vector_store %arg5[%c0_17, %c0_18], %20 {strides = array<i32>} : memref<4x256xf32, #tpu.memory_space<vmem>>, vector<4x256xf32>,
      %cst_19 = arith.constant 0.000000e+00 : f32
      %22 = vector.broadcast %cst_19 : f32 to vector<4x256xf32>
      %c0_20 = arith.constant 0 : index
      %c0_21 = arith.constant 0 : index
      %23 = vector.load %arg6[%c0_20, %c0_21] : memref<4x256xf32, #tpu.memory_space<vmem>>, vector<4x256xf32>
      tpu.vector_store %arg6[%c0_20, %c0_21], %22 {strides = array<i32>} : memref<4x256xf32, #tpu.memory_space<vmem>>, vector<4x256xf32>,
    } else {
    }
    %c0 = arith.constant 0 : index
    %c0_2 = arith.constant 0 : index
    %c0_3 = arith.constant 0 : index
    %5 = vector.load %arg2[%c0, %c0_2, %c0_3] : memref<2x4x256xf32, #tpu.memory_space<vmem>>, vector<2x4x256xf32>
    %c0_4 = arith.constant 0 : index
    %c0_5 = arith.constant 0 : index
    %6 = vector.load %arg5[%c0_4, %c0_5] : memref<4x256xf32, #tpu.memory_space<vmem>>, vector<4x256xf32>
    %cst = arith.constant dense<0.000000e+00> : vector<4x256xf32>
    %7 = vector.multi_reduction <add>, %5, %cst [0] : vector<2x4x256xf32> to vector<4x256xf32>
    %8 = arith.addf %6, %7 : vector<4x256xf32>
    %c0_6 = arith.constant 0 : index
    %c0_7 = arith.constant 0 : index
    %9 = vector.load %arg5[%c0_6, %c0_7] : memref<4x256xf32, #tpu.memory_space<vmem>>, vector<4x256xf32>
    tpu.vector_store %arg5[%c0_6, %c0_7], %8 {strides = array<i32>} : memref<4x256xf32, #tpu.memory_space<vmem>>, vector<4x256xf32>,
    %c0_8 = arith.constant 0 : index
    %c0_9 = arith.constant 0 : index
    %10 = vector.load %arg6[%c0_8, %c0_9] : memref<4x256xf32, #tpu.memory_space<vmem>>, vector<4x256xf32>
    %11 = arith.mulf %5, %5 : vector<2x4x256xf32>
    %cst_10 = arith.constant dense<0.000000e+00> : vector<4x256xf32>
    %12 = vector.multi_reduction <add>, %11, %cst_10 [0] : vector<2x4x256xf32> to vector<4x256xf32>
    %13 = arith.addf %10, %12 : vector<4x256xf32>
    %c0_11 = arith.constant 0 : index
    %c0_12 = arith.constant 0 : index
    %14 = vector.load %arg6[%c0_11, %c0_12] : memref<4x256xf32, #tpu.memory_space<vmem>>, vector<4x256xf32>
    tpu.vector_store %arg6[%c0_11, %c0_12], %13 {strides = array<i32>} : memref<4x256xf32, #tpu.memory_space<vmem>>, vector<4x256xf32>,
    %c0_i32_13 = arith.constant 0 : i32
    %15 = arith.cmpi eq, %arg0, %c0_i32_13 : i32
    %c0_i32_14 = arith.constant 0 : i32
    %16 = arith.cmpi eq, %arg1, %c0_i32_14 : i32
    %17 = arith.andi %15, %16 : i1
    %18 = arith.extui %17 : i1 to i32
    %c0_i32_15 = arith.constant 0 : i32
    %19 = arith.cmpi ne, %18, %c0_i32_15 : i32
    scf.if %19 {
      %c0_16 = arith.constant 0 : index
      %c0_17 = arith.constant 0 : index
      %20 = vector.load %arg5[%c0_16, %c0_17] : memref<4x256xf32, #tpu.memory_space<vmem>>, vector<4x256xf32>
      %cst_18 = arith.constant dense<0.000000e+00> : vector<4xf32>
      %21 = vector.multi_reduction <add>, %20, %cst_18 [1] : vector<4x256xf32> to vector<4xf32>
      %22 = vector.shape_cast %21 : vector<4xf32> to vector<4x1xf32>
      %cst_19 = arith.constant 0.001953125 : f32
      %23 = vector.broadcast %cst_19 : f32 to vector<4x1xf32>
      %24 = arith.mulf %22, %23 : vector<4x1xf32>
      %c0_20 = arith.constant 0 : index
      %c0_21 = arith.constant 0 : index
      %25 = vector.load %arg6[%c0_20, %c0_21] : memref<4x256xf32, #tpu.memory_space<vmem>>, vector<4x256xf32>
      %cst_22 = arith.constant dense<0.000000e+00> : vector<4xf32>
      %26 = vector.multi_reduction <add>, %25, %cst_22 [1] : vector<4x256xf32> to vector<4xf32>
      %27 = vector.shape_cast %26 : vector<4xf32> to vector<4x1xf32>
      %cst_23 = arith.constant 0.001953125 : f32
      %28 = vector.broadcast %cst_23 : f32 to vector<4x1xf32>
      %29 = arith.mulf %27, %28 : vector<4x1xf32>
      %30 = arith.mulf %24, %24 : vector<4x1xf32>
      %31 = arith.subf %29, %30 : vector<4x1xf32>
      %cst_24 = arith.constant 0.000000e+00 : f32
      %32 = vector.broadcast %cst_24 : f32 to vector<4x1xf32>
      %33 = arith.maximumf %31, %32 : vector<4x1xf32>
      %c0_25 = arith.constant 0 : index
      %c0_26 = arith.constant 0 : index
      %34 = vector.load %arg3[%c0_25, %c0_26] : memref<4x1xf32, #tpu.memory_space<vmem>>, vector<4x1xf32>
      tpu.vector_store %arg3[%c0_25, %c0_26], %24 {strides = array<i32>} : memref<4x1xf32, #tpu.memory_space<vmem>>, vector<4x1xf32>,
      %cst_27 = arith.constant 9.99999974E-6 : f32
      %35 = vector.broadcast %cst_27 : f32 to vector<4x1xf32>
      %36 = arith.addf %33, %35 : vector<4x1xf32>
      %37 = math.rsqrt %36 : vector<4x1xf32>
      %c0_28 = arith.constant 0 : index
      %c0_29 = arith.constant 0 : index
      %38 = vector.load %arg4[%c0_28, %c0_29] : memref<4x1xf32, #tpu.memory_space<vmem>>, vector<4x1xf32>
      tpu.vector_store %arg4[%c0_28, %c0_29], %37 {strides = array<i32>} : memref<4x1xf32, #tpu.memory_space<vmem>>, vector<4x1xf32>,
    } else {
    }
    return
  }
  func.func @transform_0(%arg0: i32, %arg1: i32) -> (i32, i32, i32) {
    %c0_i32 = arith.constant 0 : i32
    %c0_i32_0 = arith.constant 0 : i32
    return %arg0, %c0_i32, %arg1 : i32, i32, i32
  }
  func.func @transform_1(%arg0: i32, %arg1: i32) -> (i32, i32) {
    %c0_i32 = arith.constant 0 : i32
    %c0_i32_0 = arith.constant 0 : i32
    %c0_i32_1 = arith.constant 0 : i32
    return %c0_i32, %c0_i32_0 : i32, i32
  }
  func.func @transform_2(%arg0: i32, %arg1: i32) -> (i32, i32) {
    %c0_i32 = arith.constant 0 : i32
    %c0_i32_0 = arith.constant 0 : i32
    %c0_i32_1 = arith.constant 0 : i32
    return %c0_i32, %c0_i32_0 : i32, i32
  }
}

</mosaic_0001>

<llo_original>
// kernel: tpu_custom_call.1
$region0: #{tpu_custom_call.1}
  #allocation0 [shape = 'u32[]', space=smem, size = 0x4, offset = 0x4, fixed_abs, tag = 'smem constant byte address 0x4 - core index']
  #allocation1 [shape = 'u32[144,128]{1,0:T(1,128)}', space=vmem, size = 0x12000, scoped, tag = 'internal scratch']
  #allocation2 [shape = 'f32[4,256]{1,0:T(4,128)}', space=vmem, size = 0x1000, scoped, tag = 'scratch operand']
  #allocation3 [shape = 'f32[4,256]{1,0:T(4,128)}', space=vmem, size = 0x1000, scoped, tag = 'scratch operand']
  %s0 = inlined_call_operand.hbm [shape: f32[2,4,256], index: 0, kind: input, shape index: {}]
  %s1 = inlined_call_operand.vmem [shape: f32[4,1], index: 1, kind: output, shape index: {0}]
  %s2 = inlined_call_operand.vmem [shape: f32[4,1], index: 2, kind: output, shape index: {1}]
  %3 = xla_tuple %s1, %s2
  %s4 = sld [smem:[#allocation0]]
  $region34: #{tpu_custom_call.1} parent=0
    _
  %s6 = ssub.s32 1, %s4
  %s7 = scalar_select 0, %s6, %s4
  $region1: #{tpu_custom_call.1} parent=0
    #allocation4 [shape = 'u8[8192]{0}', space=vmem, size = 0x2000, scoped, tag = 'input window, operand 0, single buffered']
    #allocation5 [shape = 's32[1]{0}', space=sflag, size = 0x4, scoped, tag = 'scoped memory for tpu_custom_call.1']
    %8 = vsyncpa [#allocation5], 0
    // Predicated region
    $region2: #{tpu_custom_call.1} parent=1 // pred_check
      _
    $region3: #{tpu_custom_call.1} parent=1 // pred_check_branch
      %10 = sbr.rel (0) target = $region5
    $region4: #{tpu_custom_call.1} parent=1 // pred_region
      %s12 = ssub.s32 256, 256
      %13 = vsyncadd [#allocation5], %s12
      %s14 = sshll.u32 [#allocation4], 4
      %s15 = int_to_ptr.vmem [resolvable:$true] %s14
      %20 = dma.hbm_to_vmem [thread:$0]  %s0, 256, %s15, [#allocation5], 128, 128, 8
    $region5: #{tpu_custom_call.1} parent=1 // pred_fallthru
      _
    // Predicated region
    $region6: #{tpu_custom_call.1} parent=1 // pred_check
      _
    $region7: #{tpu_custom_call.1} parent=1 // pred_check_branch
      %22 = sbr.rel (0) target = $region9
    $region8: #{tpu_custom_call.1} parent=1 // pred_region
      %23 = dma.done [#allocation5], 256
    $region9: #{tpu_custom_call.1} parent=1 // pred_fallthru
      _
    %p24 = scmp.eq.s32.totalorder 0, 0
    %p25 = scmp.eq.s32.totalorder 0, 0
    %p26 = pnand %p24, %p25
    %p27 = pneg %p26
    // Predicated region
    $region10: #{tpu_custom_call.1} parent=1 // pred_check
      _
    $region11: #{tpu_custom_call.1} parent=1 // pred_check_branch
      %29 = sbr.rel (%p26) target = $region13
    $region12: #{tpu_custom_call.1} parent=1 // pred_region
      %30 = vst [vmem:[#allocation2] sm:$0xff] 0.0
      %31 = vst [vmem:[#allocation3] sm:$0xff] 0.0
    $region13: #{tpu_custom_call.1} parent=1 // pred_fallthru
      _
    %v32 = vld [vmem:[#allocation4] sm:$0xff]
    %v33 = vld [vmem:[#allocation4 + $0x8] sm:$0xff]
    %v34 = vld [vmem:[#allocation2] sm:$0xff]
    %v37 = vcombine.high %v32, %v32
    %v38 = vcombine.high %v33, %v33
    %vm41 = vcmask 1043456
    %v42 = vsel %vm41, %v32, 0.0
    %v43 = vsel %vm41, %v33, 0.0
    %v44 = vadd.f32 %v42, %v43
    %v45 = vsel %vm41, %v37, 0.0
    %v46 = vsel %vm41, %v38, 0.0
    %v47 = vadd.f32 %v45, %v46
    %v50 = vcombine.low %v44, %v47
    %v52 = vadd.f32 %v34, %v50
    %53 = vst [vmem:[#allocation2] sm:$0xff] %v52
    %v54 = vld [vmem:[#allocation3] sm:$0xff]
    %v55 = vmul.f32 %v32, %v32
    %v56 = vmul.f32 %v33, %v33
    %v59 = vcombine.high %v55, %v55
    %v60 = vcombine.high %v56, %v56
    %v63 = vsel %vm41, %v55, 0.0
    %v64 = vsel %vm41, %v56, 0.0
    %v65 = vadd.f32 %v63, %v64
    %v66 = vsel %vm41, %v59, 0.0
    %v67 = vsel %vm41, %v60, 0.0
    %v68 = vadd.f32 %v66, %v67
    %v71 = vcombine.low %v65, %v68
    %v73 = vadd.f32 %v54, %v71
    %74 = vst [vmem:[#allocation3] sm:$0xff] %v73
    // Predicated region
    $region14: #{tpu_custom_call.1} parent=1 // pred_check
      _
    $region15: #{tpu_custom_call.1} parent=1 // pred_check_branch
      %76 = sbr.rel (%p26) target = $region17
    $region16: #{tpu_custom_call.1} parent=1 // pred_region
      %v77 = vld [vmem:[#allocation2] sm:$0xff]
      %v79 = vcombine.high %v77, %v77
      %v81 = vsel %vm41, %v77, 0.0
      %v82 = vsel %vm41, %v79, 0.0
      %v83 = vadd.f32 %v81, %v82
      %84 = vadd.xlane.f32.xlu0 %v83
      %v85 = vpop.xlane.xlu0 %84
      %v86 = vmul.f32 %v85, 0.001953125
      %v87 = vld [vmem:[#allocation3] sm:$0xff]
      %v89 = vcombine.high %v87, %v87
      %v91 = vsel %vm41, %v87, 0.0
      %v92 = vsel %vm41, %v89, 0.0
      %v93 = vadd.f32 %v91, %v92
      %94 = vadd.xlane.f32.xlu0 %v93
      %v95 = vpop.xlane.xlu0 %94
      %v96 = vmul.f32 %v95, 0.001953125
      %v97 = vmul.f32 %v86, %v86
      %v98 = vsub.f32 %v96, %v97
      %v99 = vmax.f32 %v98, 0.0
      %vm100 = vcmask 3072
      %101 = vst.msk [vmem:[%s1] sm:$0xf] %vm100, %v86
      %v102 = vadd.f32 %v99, 1e-05
      %v103 = vrsqrt.pop %v102
      %104 = vst.msk [vmem:[%s2] sm:$0xf] %vm100, %v103
    $region17: #{tpu_custom_call.1} parent=1 // pred_fallthru
      _
    // Predicated region
    $region18: #{tpu_custom_call.1} parent=1 // pred_check
      _
    $region19: #{tpu_custom_call.1} parent=1 // pred_check_branch
      %106 = sbr.rel (0) target = $region21
    $region20: #{tpu_custom_call.1} parent=1 // pred_region
      _
    $region21: #{tpu_custom_call.1} parent=1 // pred_fallthru
      _
    // Predicated region
    $region22: #{tpu_custom_call.1} parent=1 // pred_check
      _
    $region23: #{tpu_custom_call.1} parent=1 // pred_check_branch
      %108 = sbr.rel (0) target = $region25
    $region24: #{tpu_custom_call.1} parent=1 // pred_region
      _
    $region25: #{tpu_custom_call.1} parent=1 // pred_fallthru
      _
    // Predicated region
    $region26: #{tpu_custom_call.1} parent=1 // pred_check
      _
    $region27: #{tpu_custom_call.1} parent=1 // pred_check_branch
      %110 = sbr.rel (0) target = $region29
    $region28: #{tpu_custom_call.1} parent=1 // pred_region
      _
    $region29: #{tpu_custom_call.1} parent=1 // pred_fallthru
      _
    // Predicated region
    $region30: #{tpu_custom_call.1} parent=1 // pred_check
      _
    $region31: #{tpu_custom_call.1} parent=1 // pred_check_branch
      %112 = sbr.rel (0) target = $region33
    $region32: #{tpu_custom_call.1} parent=1 // pred_region
      _
    $region33: #{tpu_custom_call.1} parent=1 // pred_fallthru
      _
    %113 = vsyncpa [#allocation5], 1

</llo_original>
